<compile_context>
chip_gen: v7x
topology: tpu7x:2x2x1
jax: 0.10.0
libtpu: 0.0.40
codegen_flags: <defaults>
</compile_context>

<pallas_src>
import functools

import jax
import jax.numpy as jnp
from jax import lax
from jax.experimental import pallas as pl
from jax.experimental.pallas import tpu as pltpu


def tsne_kernel(w_ref, pij_ref, ii_ref, jj_ref, out_ref,
                lhs_scr, rhs_scr, lanes_scr, bterm_scr, psum_scr,
                *, tile, n_valid):
    r = pl.program_id(0)
    c = pl.program_id(1)
    n_pad, d_aug = lhs_scr.shape
    d = w_ref.shape[1]
    batch = pij_ref.shape[0]

    @pl.when(jnp.logical_and(r == 0, c == 0))
    def _init():
        x = w_ref[...].astype(jnp.float32)                          # (N, D)
        sq = jnp.sum(x * x, axis=1, keepdims=True) + 0.5            # (N, 1) = |x|^2 + 0.5
        ones = jnp.ones((n_valid, 1), jnp.float32)

        if n_pad > n_valid:
            # Sentinel rows for the padded tail: any pair touching a padded row dots
            # to >= 1e30, so its reciprocal contributes ~1e-30 to `part` (negligible).
            big = jnp.float32(1e30)
            lane = lax.broadcasted_iota(jnp.int32, (n_pad, d_aug), 1)
            lhs_scr[...] = jnp.where(lane == d, big,
                                     jnp.where(lane == d + 1, 1.0, 0.0))
            rhs_scr[...] = jnp.where(lane == d, 1.0,
                                     jnp.where(lane == d + 1, big, 0.0))

        # Augmented matrices so that one_plus = lhs_aug @ rhs_aug^T == 1 + dkl2
        # (rank-1 broadcast adds folded into the K-starved, otherwise idle MXU).
        lhs_scr[pl.ds(0, n_valid), pl.ds(0, d)] = x
        lhs_scr[pl.ds(0, n_valid), pl.ds(d, 1)] = sq
        lhs_scr[pl.ds(0, n_valid), pl.ds(d + 1, 1)] = ones
        rhs_scr[pl.ds(0, n_valid), pl.ds(0, d)] = -(x + x)
        rhs_scr[pl.ds(0, n_valid), pl.ds(d, 1)] = ones
        rhs_scr[pl.ds(0, n_valid), pl.ds(d + 1, 1)] = sq

        lanes_scr[...] = jnp.zeros_like(lanes_scr)

        # Batch term via one-hot MXU gather: (xi - xj) = (onehot_i - onehot_j) @ x.
        col_ids = lax.broadcasted_iota(jnp.int32, (batch, n_valid), 1)
        oh = ((col_ids == ii_ref[...]).astype(jnp.float32)
              - (col_ids == jj_ref[...]).astype(jnp.float32))       # (B, N)
        diff = jnp.dot(oh, x, preferred_element_type=jnp.float32)   # (B, D)
        s = jnp.float32(d) + jnp.sum(diff * diff, axis=1, keepdims=True)  # (B, 1) = S_b
        p = pij_ref[...].astype(jnp.float32)                        # (B, 1)
        # loss = sum(pij*(log pij + log S_b)) + log(part) * sum(pij)
        bterm_scr[...] = jnp.sum(p * (jnp.log(p) + jnp.log(s)), keepdims=True)
        psum_scr[...] = jnp.sum(p, keepdims=True)

    # ---- pairwise tile (r, c): (tile, tile) block of (1 + dkl2) straight off the MXU ----
    row_start = pl.multiple_of(r * tile, tile)
    col_start = pl.multiple_of(c * tile, tile)
    lhs = lhs_scr[pl.ds(row_start, tile), :]                        # (tile, D+2)
    rhs = rhs_scr[pl.ds(col_start, tile), :]                        # (tile, D+2)
    one_plus = lax.dot_general(lhs, rhs,
                               dimension_numbers=(((1,), (1,)), ((), ())),
                               preferred_element_type=jnp.float32)  # (tile, tile)
    one_plus = jnp.maximum(one_plus, 1.0)                           # 1 + dkl2 >= 1
    recip = pl.reciprocal(one_plus, approx=True)                    # EUP slot, not VALU
    # Deferred reduction: lane-dense partial sums, single lane reduce in finalize.
    lanes_scr[...] += jnp.sum(recip, axis=0, keepdims=True)         # (1, tile)

    @pl.when(jnp.logical_and(r == pl.num_programs(0) - 1,
                             c == pl.num_programs(1) - 1))
    def _finalize():
        part = jnp.sum(lanes_scr[...], keepdims=True) - jnp.float32(n_valid)
        out_ref[...] = bterm_scr[...] + jnp.log(part) * psum_scr[...]


def _round_up(x, m):
    return ((x + m - 1) // m) * m


def _pick_tile(n):
    # Tile cap 512: ~3 live (tile, tile) f32 slabs stay ~3 MiB, safely inside v5e's
    # 16 MiB default scoped VMEM and v7x's 64 MiB physical VMEM, while the ~0.35 us
    # per-step grid overhead stays amortized.
    return min(512, _round_up(n, 128))


def tsne_forward(weight, pij, i, j):
    n, d = weight.shape
    b = pij.shape[0]
    tile = _pick_tile(n)
    n_pad = _round_up(n, tile)
    grid = (n_pad // tile, n_pad // tile)

    kernel = functools.partial(tsne_kernel, tile=tile, n_valid=n)
    pij2 = pij.reshape(b, 1).astype(jnp.float32)
    ii = i.reshape(b, 1).astype(jnp.int32)
    jj = j.reshape(b, 1).astype(jnp.int32)

    out = pl.pallas_call(
        kernel,
        out_shape=jax.ShapeDtypeStruct((1, 1), jnp.float32),
        grid_spec=pltpu.PrefetchScalarGridSpec(
            num_scalar_prefetch=0,
            grid=grid,
            in_specs=[
                pl.BlockSpec((n, d), lambda r, c: (0, 0)),   # full weight, resident
                pl.BlockSpec((b, 1), lambda r, c: (0, 0)),   # pij as (B, 1)
                pl.BlockSpec((b, 1), lambda r, c: (0, 0)),   # i  as (B, 1) int32
                pl.BlockSpec((b, 1), lambda r, c: (0, 0)),   # j  as (B, 1) int32
            ],
            out_specs=pl.BlockSpec((1, 1), lambda r, c: (0, 0)),
            scratch_shapes=[
                pltpu.VMEM((n_pad, d + 2), jnp.float32),  # augmented LHS rows
                pltpu.VMEM((n_pad, d + 2), jnp.float32),  # augmented RHS rows
                pltpu.VMEM((1, tile), jnp.float32),       # lane-dense partial part sums
                pltpu.VMEM((1, 1), jnp.float32),          # batch log term
                pltpu.VMEM((1, 1), jnp.float32),          # sum(pij)
            ],
        ),
        compiler_params=pltpu.CompilerParams(
            dimension_semantics=("arbitrary", "arbitrary")),
    )(weight.astype(jnp.float32), pij2, ii, jj)
    return out[0, 0]


def tsne_reference(weight, pij, i, j):
    x = weight.astype(jnp.float32)
    diff = x[None, :, :] - x[:, None, :]
    dkl2 = jnp.sum(diff * diff, axis=2)
    part = jnp.sum(1.0 / (1.0 + dkl2)) - x.shape[0]
    xi, xj = weight[i], weight[j]
    num = 1.0 / jnp.sum(1.0 + (xi - xj) ** 2, axis=1)
    qij = num / part
    return jnp.sum(pij * (jnp.log(pij) - jnp.log(qij)))


if __name__ == "__main__":
    n_points, n_topics, batch = 128, 16, 32

    key = jax.random.PRNGKey(0)
    kw, kp, ki, kj = jax.random.split(key, 4)

    # nn.Embedding(n_points, n_topics) default init: N(0, 1)
    weight = jax.random.normal(kw, (n_points, n_topics), dtype=jnp.float32)

    pij = jax.random.uniform(kp, (batch,), dtype=jnp.float32, minval=0.1, maxval=1.0)
    pij = pij / jnp.sum(pij)                                   # positive "probabilities"
    i = jax.random.randint(ki, (batch,), 0, n_points, dtype=jnp.int32)
    j = jax.random.randint(kj, (batch,), 0, n_points, dtype=jnp.int32)

    loss = jax.jit(tsne_forward)(weight, pij, i, j)
    jax.block_until_ready(loss)

    ref = tsne_reference(weight, pij, i, j)
    # approx reciprocal (EUP) shifts `part` at the ~1e-3 relative level inside the
    # log, so the self-check tolerance is relaxed accordingly.
    assert jnp.allclose(loss, ref, rtol=2e-3, atol=2e-3), (loss, ref)

    print("KERNEL_OK")
</pallas_src>

<mosaic_0001>
module attributes {stable_mosaic.version = 11 : i64} {
  func.func @tsne_kernel(%arg0: i32, %arg1: i32, %arg2: memref<128x16xf32, #tpu.memory_space<vmem>>, %arg3: memref<32x1xf32, #tpu.memory_space<vmem>>, %arg4: memref<32x1xi32, #tpu.memory_space<vmem>>, %arg5: memref<32x1xi32, #tpu.memory_space<vmem>>, %arg6: memref<1x1xf32, #tpu.memory_space<vmem>>, %arg7: memref<128x18xf32, #tpu.memory_space<vmem>>, %arg8: memref<128x18xf32, #tpu.memory_space<vmem>>, %arg9: memref<1x128xf32, #tpu.memory_space<vmem>>, %arg10: memref<1x1xf32, #tpu.memory_space<vmem>>, %arg11: memref<1x1xf32, #tpu.memory_space<vmem>>) attributes {dimension_semantics = [#tpu.dimension_semantics<arbitrary>, #tpu.dimension_semantics<arbitrary>], iteration_bounds = array<i64: 1, 1>, scalar_prefetch = 0 : i64, scratch_operands = 5 : i64, tpu.core_type = #tpu.core_type<tc>, window_params = [{pipeline_mode = #tpu.pipeline_mode<synchronous>, transform_indices = @transform_0, window_bounds = array<i64: 128, 16>}, {pipeline_mode = #tpu.pipeline_mode<synchronous>, transform_indices = @transform_1, window_bounds = array<i64: 32, 1>}, {pipeline_mode = #tpu.pipeline_mode<synchronous>, transform_indices = @transform_2, window_bounds = array<i64: 32, 1>}, {pipeline_mode = #tpu.pipeline_mode<synchronous>, transform_indices = @transform_3, window_bounds = array<i64: 32, 1>}, {pipeline_mode = #tpu.pipeline_mode<synchronous>, transform_indices = @transform_4, window_bounds = array<i64: 1, 1>}]} {
    %c0_i32 = arith.constant 0 : i32
    %0 = arith.cmpi eq, %arg0, %c0_i32 : i32
    %c0_i32_0 = arith.constant 0 : i32
    %1 = arith.cmpi eq, %arg1, %c0_i32_0 : i32
    %2 = arith.andi %0, %1 : i1
    %3 = arith.extui %2 : i1 to i32
    %c0_i32_1 = arith.constant 0 : i32
    %4 = arith.cmpi ne, %3, %c0_i32_1 : i32
    scf.if %4 {
      %c0_13 = arith.constant 0 : index
      %c0_14 = arith.constant 0 : index
      %27 = vector.load %arg2[%c0_13, %c0_14] : memref<128x16xf32, #tpu.memory_space<vmem>>, vector<128x16xf32>
      %28 = arith.mulf %27, %27 : vector<128x16xf32>
      %cst_15 = arith.constant dense<0.000000e+00> : vector<128xf32>
      %29 = vector.multi_reduction <add>, %28, %cst_15 [1] : vector<128x16xf32> to vector<128xf32>
      %30 = vector.shape_cast %29 : vector<128xf32> to vector<128x1xf32>
      %cst_16 = arith.constant 5.000000e-01 : f32
      %31 = vector.broadcast %cst_16 : f32 to vector<128x1xf32>
      %32 = arith.addf %30, %31 : vector<128x1xf32>
      %cst_17 = arith.constant 1.000000e+00 : f32
      %33 = vector.broadcast %cst_17 : f32 to vector<128x1xf32>
      %c0_18 = arith.constant 0 : index
      %c0_19 = arith.constant 0 : index
      %34 = vector.load %arg7[%c0_18, %c0_19] : memref<128x18xf32, #tpu.memory_space<vmem>>, vector<128x16xf32>
      tpu.vector_store %arg7[%c0_18, %c0_19], %27 {strides = array<i32>} : memref<128x18xf32, #tpu.memory_space<vmem>>, vector<128x16xf32>,
      %c0_20 = arith.constant 0 : index
      %c16 = arith.constant 16 : index
      %35 = vector.load %arg7[%c0_20, %c16] : memref<128x18xf32, #tpu.memory_space<vmem>>, vector<128x1xf32>
      tpu.vector_store %arg7[%c0_20, %c16], %32 {strides = array<i32>} : memref<128x18xf32, #tpu.memory_space<vmem>>, vector<128x1xf32>,
      %c0_21 = arith.constant 0 : index
      %c17 = arith.constant 17 : index
      %36 = vector.load %arg7[%c0_21, %c17] : memref<128x18xf32, #tpu.memory_space<vmem>>, vector<128x1xf32>
      tpu.vector_store %arg7[%c0_21, %c17], %33 {strides = array<i32>} : memref<128x18xf32, #tpu.memory_space<vmem>>, vector<128x1xf32>,
      %37 = arith.addf %27, %27 : vector<128x16xf32>
      %cst_22 = arith.constant 0.000000e+00 : f32
      %38 = vector.broadcast %cst_22 : f32 to vector<128x16xf32>
      %39 = arith.subf %38, %37 : vector<128x16xf32>
      %c0_23 = arith.constant 0 : index
      %c0_24 = arith.constant 0 : index
      %40 = vector.load %arg8[%c0_23, %c0_24] : memref<128x18xf32, #tpu.memory_space<vmem>>, vector<128x16xf32>
      tpu.vector_store %arg8[%c0_23, %c0_24], %39 {strides = array<i32>} : memref<128x18xf32, #tpu.memory_space<vmem>>, vector<128x16xf32>,
      %c0_25 = arith.constant 0 : index
      %c16_26 = arith.constant 16 : index
      %41 = vector.load %arg8[%c0_25, %c16_26] : memref<128x18xf32, #tpu.memory_space<vmem>>, vector<128x1xf32>
      tpu.vector_store %arg8[%c0_25, %c16_26], %33 {strides = array<i32>} : memref<128x18xf32, #tpu.memory_space<vmem>>, vector<128x1xf32>,
      %c0_27 = arith.constant 0 : index
      %c17_28 = arith.constant 17 : index
      %42 = vector.load %arg8[%c0_27, %c17_28] : memref<128x18xf32, #tpu.memory_space<vmem>>, vector<128x1xf32>
      tpu.vector_store %arg8[%c0_27, %c17_28], %32 {strides = array<i32>} : memref<128x18xf32, #tpu.memory_space<vmem>>, vector<128x1xf32>,
      %cst_29 = arith.constant 0.000000e+00 : f32
      %43 = vector.broadcast %cst_29 : f32 to vector<1x128xf32>
      %c0_30 = arith.constant 0 : index
      %c0_31 = arith.constant 0 : index
      %44 = vector.load %arg9[%c0_30, %c0_31] : memref<1x128xf32, #tpu.memory_space<vmem>>, vector<1x128xf32>
      tpu.vector_store %arg9[%c0_30, %c0_31], %43 {strides = array<i32>} : memref<1x128xf32, #tpu.memory_space<vmem>>, vector<1x128xf32>,
      %45 = tpu.iota {dimensions = array<i32: 1>} : vector<32x128xi32>
      %c0_32 = arith.constant 0 : index
      %c0_33 = arith.constant 0 : index
      %46 = vector.load %arg4[%c0_32, %c0_33] : memref<32x1xi32, #tpu.memory_space<vmem>>, vector<32x1xi32>
      %47 = vector.broadcast %46 : vector<32x1xi32> to vector<32x128xi32>
      %48 = arith.cmpi eq, %45, %47 : vector<32x128xi32>
      %49 = arith.extui %48 : vector<32x128xi1> to vector<32x128xi32>
      %50 = arith.sitofp %49 : vector<32x128xi32> to vector<32x128xf32>
      %c0_34 = arith.constant 0 : index
      %c0_35 = arith.constant 0 : index
      %51 = vector.load %arg5[%c0_34, %c0_35] : memref<32x1xi32, #tpu.memory_space<vmem>>, vector<32x1xi32>
      %52 = vector.broadcast %51 : vector<32x1xi32> to vector<32x128xi32>
      %53 = arith.cmpi eq, %45, %52 : vector<32x128xi32>
      %54 = arith.extui %53 : vector<32x128xi1> to vector<32x128xi32>
      %55 = arith.sitofp %54 : vector<32x128xi32> to vector<32x128xf32>
      %56 = arith.subf %50, %55 : vector<32x128xf32>
      %cst_36 = arith.constant dense<0.000000e+00> : vector<32x16xf32>
      %57 = tpu.matmul %56, %27, %cst_36 {dimension_numbers = #tpu.dot_dimension_numbers<[1], [0], [0], [1], [0, 0, 1, 1], [], []>} : vector<32x128xf32>, vector<128x16xf32>, vector<32x16xf32> -> vector<32x16xf32>
      %58 = arith.mulf %57, %57 : vector<32x16xf32>
      %cst_37 = arith.constant dense<0.000000e+00> : vector<32xf32>
      %59 = vector.multi_reduction <add>, %58, %cst_37 [1] : vector<32x16xf32> to vector<32xf32>
      %60 = vector.shape_cast %59 : vector<32xf32> to vector<32x1xf32>
      %cst_38 = arith.constant 1.600000e+01 : f32
      %61 = vector.broadcast %cst_38 : f32 to vector<32x1xf32>
      %62 = arith.addf %61, %60 : vector<32x1xf32>
      %c0_39 = arith.constant 0 : index
      %c0_40 = arith.constant 0 : index
      %63 = vector.load %arg3[%c0_39, %c0_40] : memref<32x1xf32, #tpu.memory_space<vmem>>, vector<32x1xf32>
      %64 = math.log %63 : vector<32x1xf32>
      %65 = math.log %62 : vector<32x1xf32>
      %66 = arith.addf %64, %65 : vector<32x1xf32>
      %67 = arith.mulf %63, %66 : vector<32x1xf32>
      %68 = vector.shape_cast %67 : vector<32x1xf32> to vector<1x32x1xf32>
      %cst_41 = arith.constant dense<0.000000e+00> : vector<1xf32>
      %69 = vector.multi_reduction <add>, %68, %cst_41 [1, 2] : vector<1x32x1xf32> to vector<1xf32>
      %70 = vector.shape_cast %69 : vector<1xf32> to vector<1x1x1xf32>
      %71 = vector.extract %70[0, 0, 0] : f32 from vector<1x1x1xf32>
      %72 = vector.broadcast %71 : f32 to vector<1x1xf32>
      %c0_42 = arith.constant 0 : index
      %c0_43 = arith.constant 0 : index
      %73 = vector.load %arg10[%c0_42, %c0_43] : memref<1x1xf32, #tpu.memory_space<vmem>>, vector<1x1xf32>
      tpu.vector_store %arg10[%c0_42, %c0_43], %72 {strides = array<i32>} : memref<1x1xf32, #tpu.memory_space<vmem>>, vector<1x1xf32>,
      %74 = vector.shape_cast %63 : vector<32x1xf32> to vector<1x32x1xf32>
      %cst_44 = arith.constant dense<0.000000e+00> : vector<1xf32>
      %75 = vector.multi_reduction <add>, %74, %cst_44 [1, 2] : vector<1x32x1xf32> to vector<1xf32>
      %76 = vector.shape_cast %75 : vector<1xf32> to vector<1x1x1xf32>
      %77 = vector.extract %76[0, 0, 0] : f32 from vector<1x1x1xf32>
      %78 = vector.broadcast %77 : f32 to vector<1x1xf32>
      %c0_45 = arith.constant 0 : index
      %c0_46 = arith.constant 0 : index
      %79 = vector.load %arg11[%c0_45, %c0_46] : memref<1x1xf32, #tpu.memory_space<vmem>>, vector<1x1xf32>
      tpu.vector_store %arg11[%c0_45, %c0_46], %78 {strides = array<i32>} : memref<1x1xf32, #tpu.memory_space<vmem>>, vector<1x1xf32>,
    } else {
    }
    %c128_i32 = arith.constant 128 : i32
    %5 = arith.muli %arg0, %c128_i32 : i32
    %6 = tpu.assume_multiple %5, 128 : i32
    %c128_i32_2 = arith.constant 128 : i32
    %7 = arith.muli %arg1, %c128_i32_2 : i32
    %8 = tpu.assume_multiple %7, 128 : i32
    %9 = arith.index_cast %6 : i32 to index
    %c0 = arith.constant 0 : index
    %10 = vector.load %arg7[%9, %c0] : memref<128x18xf32, #tpu.memory_space<vmem>>, vector<128x18xf32>
    %11 = arith.index_cast %8 : i32 to index
    %c0_3 = arith.constant 0 : index
    %12 = vector.load %arg8[%11, %c0_3] : memref<128x18xf32, #tpu.memory_space<vmem>>, vector<128x18xf32>
    %cst = arith.constant dense<0.000000e+00> : vector<128x128xf32>
    %13 = tpu.matmul %10, %12, %cst {dimension_numbers = #tpu.dot_dimension_numbers<[1], [1], [0], [0], [0, 0, 1, 0], [], []>} : vector<128x18xf32>, vector<128x18xf32>, vector<128x128xf32> -> vector<128x128xf32>
    %cst_4 = arith.constant 1.000000e+00 : f32
    %14 = vector.broadcast %cst_4 : f32 to vector<128x128xf32>
    %15 = arith.maximumf %13, %14 : vector<128x128xf32>
    %16 = tpu.reciprocal %15 {approx = true} : vector<128x128xf32> -> vector<128x128xf32>
    %c0_5 = arith.constant 0 : index
    %c0_6 = arith.constant 0 : index
    %17 = vector.load %arg9[%c0_5, %c0_6] : memref<1x128xf32, #tpu.memory_space<vmem>>, vector<1x128xf32>
    %cst_7 = arith.constant dense<0.000000e+00> : vector<128xf32>
    %18 = vector.multi_reduction <add>, %16, %cst_7 [0] : vector<128x128xf32> to vector<128xf32>
    %19 = vector.shape_cast %18 : vector<128xf32> to vector<1x128xf32>
    %20 = arith.addf %17, %19 : vector<1x128xf32>
    %c0_8 = arith.constant 0 : index
    %c0_9 = arith.constant 0 : index
    %21 = vector.load %arg9[%c0_8, %c0_9] : memref<1x128xf32, #tpu.memory_space<vmem>>, vector<1x128xf32>
    tpu.vector_store %arg9[%c0_8, %c0_9], %20 {strides = array<i32>} : memref<1x128xf32, #tpu.memory_space<vmem>>, vector<1x128xf32>,
    %c0_i32_10 = arith.constant 0 : i32
    %22 = arith.cmpi eq, %arg0, %c0_i32_10 : i32
    %c0_i32_11 = arith.constant 0 : i32
    %23 = arith.cmpi eq, %arg1, %c0_i32_11 : i32
    %24 = arith.andi %22, %23 : i1
    %25 = arith.extui %24 : i1 to i32
    %c0_i32_12 = arith.constant 0 : i32
    %26 = arith.cmpi ne, %25, %c0_i32_12 : i32
    scf.if %26 {
      %c0_13 = arith.constant 0 : index
      %c0_14 = arith.constant 0 : index
      %27 = vector.load %arg9[%c0_13, %c0_14] : memref<1x128xf32, #tpu.memory_space<vmem>>, vector<1x128xf32>
      %28 = vector.shape_cast %27 : vector<1x128xf32> to vector<1x1x128xf32>
      %cst_15 = arith.constant dense<0.000000e+00> : vector<1xf32>
      %29 = vector.multi_reduction <add>, %28, %cst_15 [1, 2] : vector<1x1x128xf32> to vector<1xf32>
      %30 = vector.shape_cast %29 : vector<1xf32> to vector<1x1x1xf32>
      %31 = vector.extract %30[0, 0, 0] : f32 from vector<1x1x1xf32>
      %32 = vector.broadcast %31 : f32 to vector<1x1xf32>
      %cst_16 = arith.constant 1.280000e+02 : f32
      %33 = vector.broadcast %cst_16 : f32 to vector<1x1xf32>
      %34 = arith.subf %32, %33 : vector<1x1xf32>
      %c0_17 = arith.constant 0 : index
      %c0_18 = arith.constant 0 : index
      %35 = vector.load %arg10[%c0_17, %c0_18] : memref<1x1xf32, #tpu.memory_space<vmem>>, vector<1x1xf32>
      %36 = math.log %34 : vector<1x1xf32>
      %c0_19 = arith.constant 0 : index
      %c0_20 = arith.constant 0 : index
      %37 = vector.load %arg11[%c0_19, %c0_20] : memref<1x1xf32, #tpu.memory_space<vmem>>, vector<1x1xf32>
      %38 = arith.mulf %36, %37 : vector<1x1xf32>
      %39 = arith.addf %35, %38 : vector<1x1xf32>
      %c0_21 = arith.constant 0 : index
      %c0_22 = arith.constant 0 : index
      %40 = vector.load %arg6[%c0_21, %c0_22] : memref<1x1xf32, #tpu.memory_space<vmem>>, vector<1x1xf32>
      tpu.vector_store %arg6[%c0_21, %c0_22], %39 {strides = array<i32>} : memref<1x1xf32, #tpu.memory_space<vmem>>, vector<1x1xf32>,
    } else {
    }
    return
  }
  func.func @transform_0(%arg0: i32, %arg1: i32) -> (i32, i32) {
    %c0_i32 = arith.constant 0 : i32
    %c0_i32_0 = arith.constant 0 : i32
    %c0_i32_1 = arith.constant 0 : i32
    return %c0_i32, %c0_i32_0 : i32, i32
  }
  func.func @transform_1(%arg0: i32, %arg1: i32) -> (i32, i32) {
    %c0_i32 = arith.constant 0 : i32
    %c0_i32_0 = arith.constant 0 : i32
    %c0_i32_1 = arith.constant 0 : i32
    return %c0_i32, %c0_i32_0 : i32, i32
  }
  func.func @transform_2(%arg0: i32, %arg1: i32) -> (i32, i32) {
    %c0_i32 = arith.constant 0 : i32
    %c0_i32_0 = arith.constant 0 : i32
    %c0_i32_1 = arith.constant 0 : i32
    return %c0_i32, %c0_i32_0 : i32, i32
  }
  func.func @transform_3(%arg0: i32, %arg1: i32) -> (i32, i32) {
    %c0_i32 = arith.constant 0 : i32
    %c0_i32_0 = arith.constant 0 : i32
    %c0_i32_1 = arith.constant 0 : i32
    return %c0_i32, %c0_i32_0 : i32, i32
  }
  func.func @transform_4(%arg0: i32, %arg1: i32) -> (i32, i32) {
    %c0_i32 = arith.constant 0 : i32
    %c0_i32_0 = arith.constant 0 : i32
    %c0_i32_1 = arith.constant 0 : i32
    return %c0_i32, %c0_i32_0 : i32, i32
  }
}

</mosaic_0001>

<llo_original>
// kernel: tsne_forward.1
$region0: #{tsne_forward.1}
  #allocation0 [shape = 'u32[]', space=smem, size = 0x4, offset = 0x4, fixed_abs, tag = 'smem constant byte address 0x4 - core index']
  #allocation1 [shape = 'u32[144,128]{1,0:T(1,128)}', space=vmem, size = 0x12000, scoped, tag = 'internal scratch']
  #allocation2 [shape = 'f32[128,18]{1,0:T(8,128)}', space=vmem, size = 0x10000, scoped, tag = 'scratch operand']
  #allocation3 [shape = 'f32[128,18]{1,0:T(8,128)}', space=vmem, size = 0x10000, scoped, tag = 'scratch operand']
  #allocation4 [shape = 'f32[1,128]{1,0:T(1,128)}', space=vmem, size = 0x200, scoped, tag = 'scratch operand']
  #allocation5 [shape = 'f32[1,1]{1,0:T(1,128)}', space=vmem, size = 0x200, scoped, tag = 'scratch operand']
  #allocation6 [shape = 'f32[1,1]{1,0:T(1,128)}', space=vmem, size = 0x200, scoped, tag = 'scratch operand']
  %s0 = inlined_call_operand.vmem [shape: f32[128,16], index: 0, kind: input, shape index: {}]
  %s1 = inlined_call_operand.vmem [shape: f32[32,1], index: 1, kind: input, shape index: {}]
  %s2 = inlined_call_operand.vmem [shape: s32[32,1], index: 2, kind: input, shape index: {}]
  %s3 = inlined_call_operand.vmem [shape: s32[32,1], index: 3, kind: input, shape index: {}]
  %s4 = inlined_call_operand.hbm [shape: f32[1,1], index: 4, kind: output, shape index: {}]
  %s5 = sld [smem:[#allocation0]]
  $region34: #{tsne_forward.1} parent=0
    _
  %s7 = ssub.s32 1, %s5
  %s8 = scalar_select 0, %s7, %s5
  $region1: #{tsne_forward.1} parent=0
    #allocation7 [shape = 'u8[512]{0}', space=vmem, size = 0x400, scoped, tag = 'output window, operand 0, single buffered']
    #allocation8 [shape = 's32[1]{0}', space=sflag, size = 0x4, scoped, tag = 'scoped memory for tsne_forward.1']
    %9 = vsyncpa [#allocation8], 0
    // Predicated region
    $region2: #{tsne_forward.1} parent=1 // pred_check
      _
    $region3: #{tsne_forward.1} parent=1 // pred_check_branch
      %11 = sbr.rel (0) target = $region5
    $region4: #{tsne_forward.1} parent=1 // pred_region
      _
    $region5: #{tsne_forward.1} parent=1 // pred_fallthru
      _
    // Predicated region
    $region6: #{tsne_forward.1} parent=1 // pred_check
      _
    $region7: #{tsne_forward.1} parent=1 // pred_check_branch
      %13 = sbr.rel (0) target = $region9
    $region8: #{tsne_forward.1} parent=1 // pred_region
      _
    $region9: #{tsne_forward.1} parent=1 // pred_fallthru
      _
    // Predicated region
    $region10: #{tsne_forward.1} parent=1 // pred_check
      _
    $region11: #{tsne_forward.1} parent=1 // pred_check_branch
      %15 = sbr.rel (0) target = $region13
    $region12: #{tsne_forward.1} parent=1 // pred_region
      _
    $region13: #{tsne_forward.1} parent=1 // pred_fallthru
      _
    // Predicated region
    $region14: #{tsne_forward.1} parent=1 // pred_check
      _
    $region15: #{tsne_forward.1} parent=1 // pred_check_branch
      %17 = sbr.rel (0) target = $region17
    $region16: #{tsne_forward.1} parent=1 // pred_region
      _
    $region17: #{tsne_forward.1} parent=1 // pred_fallthru
      _
    %p18 = scmp.eq.s32.totalorder 0, 0
    %p19 = scmp.eq.s32.totalorder 0, 0
    %p20 = pnand %p18, %p19
    %p21 = pneg %p20
    // Predicated region
    $region18: #{tsne_forward.1} parent=1 // pred_check
      _
    $region19: #{tsne_forward.1} parent=1 // pred_check_branch
      %23 = sbr.rel (%p20) target = $region21
    $region20: #{tsne_forward.1} parent=1 // pred_region
      %v24 = vld [vmem:[%s0] sm:$0xff]
      %v25 = vld [vmem:[%s0 + $0x8] sm:$0xff]
      %v26 = vld [vmem:[%s0 + $0x10] sm:$0xff]
      %v27 = vld [vmem:[%s0 + $0x18] sm:$0xff]
      %v28 = vld [vmem:[%s0 + $0x20] sm:$0xff]
      %v29 = vld [vmem:[%s0 + $0x28] sm:$0xff]
      %v30 = vld [vmem:[%s0 + $0x30] sm:$0xff]
      %v31 = vld [vmem:[%s0 + $0x38] sm:$0xff]
      %v32 = vld [vmem:[%s0 + $0x40] sm:$0xff]
      %v33 = vld [vmem:[%s0 + $0x48] sm:$0xff]
      %v34 = vld [vmem:[%s0 + $0x50] sm:$0xff]
      %v35 = vld [vmem:[%s0 + $0x58] sm:$0xff]
      %v36 = vld [vmem:[%s0 + $0x60] sm:$0xff]
      %v37 = vld [vmem:[%s0 + $0x68] sm:$0xff]
      %v38 = vld [vmem:[%s0 + $0x70] sm:$0xff]
      %v39 = vld [vmem:[%s0 + $0x78] sm:$0xff]
      %v40 = vmul.f32 %v24, %v24
      %v41 = vmul.f32 %v25, %v25
      %v42 = vmul.f32 %v26, %v26
      %v43 = vmul.f32 %v27, %v27
      %v44 = vmul.f32 %v28, %v28
      %v45 = vmul.f32 %v29, %v29
      %v46 = vmul.f32 %v30, %v30
      %v47 = vmul.f32 %v31, %v31
      %v48 = vmul.f32 %v32, %v32
      %v49 = vmul.f32 %v33, %v33
      %v50 = vmul.f32 %v34, %v34
      %v51 = vmul.f32 %v35, %v35
      %v52 = vmul.f32 %v36, %v36
      %v53 = vmul.f32 %v37, %v37
      %v54 = vmul.f32 %v38, %v38
      %v55 = vmul.f32 %v39, %v39
      %vm56 = vcmask 130048
      %v57 = vsel %vm56, %v40, 0.0
      %58 = vadd.xlane.f32.xlu0 %v57
      %v59 = vpop.xlane.xlu0 %58
      %v60 = vsel %vm56, %v41, 0.0
      %61 = vadd.xlane.f32.xlu0 %v60
      %v62 = vpop.xlane.xlu0 %61
      %v63 = vsel %vm56, %v42, 0.0
      %64 = vadd.xlane.f32.xlu0 %v63
      %v65 = vpop.xlane.xlu0 %64
      %v66 = vsel %vm56, %v43, 0.0
      %67 = vadd.xlane.f32.xlu0 %v66
      %v68 = vpop.xlane.xlu0 %67
      %v69 = vsel %vm56, %v44, 0.0
      %70 = vadd.xlane.f32.xlu0 %v69
      %v71 = vpop.xlane.xlu0 %70
      %v72 = vsel %vm56, %v45, 0.0
      %73 = vadd.xlane.f32.xlu0 %v72
      %v74 = vpop.xlane.xlu0 %73
      %v75 = vsel %vm56, %v46, 0.0
      %76 = vadd.xlane.f32.xlu0 %v75
      %v77 = vpop.xlane.xlu0 %76
      %v78 = vsel %vm56, %v47, 0.0
      %79 = vadd.xlane.f32.xlu0 %v78
      %v80 = vpop.xlane.xlu0 %79
      %v81 = vsel %vm56, %v48, 0.0
      %82 = vadd.xlane.f32.xlu0 %v81
      %v83 = vpop.xlane.xlu0 %82
      %v84 = vsel %vm56, %v49, 0.0
      %85 = vadd.xlane.f32.xlu0 %v84
      %v86 = vpop.xlane.xlu0 %85
      %v87 = vsel %vm56, %v50, 0.0
      %88 = vadd.xlane.f32.xlu0 %v87
      %v89 = vpop.xlane.xlu0 %88
      %v90 = vsel %vm56, %v51, 0.0
      %91 = vadd.xlane.f32.xlu0 %v90
      %v92 = vpop.xlane.xlu0 %91
      %v93 = vsel %vm56, %v52, 0.0
      %94 = vadd.xlane.f32.xlu0 %v93
      %v95 = vpop.xlane.xlu0 %94
      %v96 = vsel %vm56, %v53, 0.0
      %97 = vadd.xlane.f32.xlu0 %v96
      %v98 = vpop.xlane.xlu0 %97
      %v99 = vsel %vm56, %v54, 0.0
      %100 = vadd.xlane.f32.xlu0 %v99
      %v101 = vpop.xlane.xlu0 %100
      %v102 = vsel %vm56, %v55, 0.0
      %103 = vadd.xlane.f32.xlu0 %v102
      %v104 = vpop.xlane.xlu0 %103
      %v105 = vadd.f32 %v59, 0.5
      %v106 = vadd.f32 %v62, 0.5
      %v107 = vadd.f32 %v65, 0.5
      %v108 = vadd.f32 %v68, 0.5
      %v109 = vadd.f32 %v71, 0.5
      %v110 = vadd.f32 %v74, 0.5
      %v111 = vadd.f32 %v77, 0.5
      %v112 = vadd.f32 %v80, 0.5
      %v113 = vadd.f32 %v83, 0.5
      %v114 = vadd.f32 %v86, 0.5
      %v115 = vadd.f32 %v89, 0.5
      %v116 = vadd.f32 %v92, 0.5
      %v117 = vadd.f32 %v95, 0.5
      %v118 = vadd.f32 %v98, 0.5
      %v119 = vadd.f32 %v101, 0.5
      %v120 = vadd.f32 %v104, 0.5
      %121 = vst.msk [vmem:[#allocation2] sm:$0xff] %vm56, %v24
      %122 = vst.msk [vmem:[#allocation2 + $0x8] sm:$0xff] %vm56, %v25
      %123 = vst.msk [vmem:[#allocation2 + $0x10] sm:$0xff] %vm56, %v26
      %124 = vst.msk [vmem:[#allocation2 + $0x18] sm:$0xff] %vm56, %v27
      %125 = vst.msk [vmem:[#allocation2 + $0x20] sm:$0xff] %vm56, %v28
      %126 = vst.msk [vmem:[#allocation2 + $0x28] sm:$0xff] %vm56, %v29
      %127 = vst.msk [vmem:[#allocation2 + $0x30] sm:$0xff] %vm56, %v30
      %128 = vst.msk [vmem:[#allocation2 + $0x38] sm:$0xff] %vm56, %v31
      %129 = vst.msk [vmem:[#allocation2 + $0x40] sm:$0xff] %vm56, %v32
      %130 = vst.msk [vmem:[#allocation2 + $0x48] sm:$0xff] %vm56, %v33
      %131 = vst.msk [vmem:[#allocation2 + $0x50] sm:$0xff] %vm56, %v34
      %132 = vst.msk [vmem:[#allocation2 + $0x58] sm:$0xff] %vm56, %v35
      %133 = vst.msk [vmem:[#allocation2 + $0x60] sm:$0xff] %vm56, %v36
      %134 = vst.msk [vmem:[#allocation2 + $0x68] sm:$0xff] %vm56, %v37
      %135 = vst.msk [vmem:[#allocation2 + $0x70] sm:$0xff] %vm56, %v38
      %136 = vst.msk [vmem:[#allocation2 + $0x78] sm:$0xff] %vm56, %v39
      %vm137 = vcmask 138368
      %138 = vst.msk [vmem:[#allocation2] sm:$0xff] %vm137, %v105
      %139 = vst.msk [vmem:[#allocation2 + $0x8] sm:$0xff] %vm137, %v106
      %140 = vst.msk [vmem:[#allocation2 + $0x10] sm:$0xff] %vm137, %v107
      %141 = vst.msk [vmem:[#allocation2 + $0x18] sm:$0xff] %vm137, %v108
      %142 = vst.msk [vmem:[#allocation2 + $0x20] sm:$0xff] %vm137, %v109
      %143 = vst.msk [vmem:[#allocation2 + $0x28] sm:$0xff] %vm137, %v110
      %144 = vst.msk [vmem:[#allocation2 + $0x30] sm:$0xff] %vm137, %v111
      %145 = vst.msk [vmem:[#allocation2 + $0x38] sm:$0xff] %vm137, %v112
      %146 = vst.msk [vmem:[#allocation2 + $0x40] sm:$0xff] %vm137, %v113
      %147 = vst.msk [vmem:[#allocation2 + $0x48] sm:$0xff] %vm137, %v114
      %148 = vst.msk [vmem:[#allocation2 + $0x50] sm:$0xff] %vm137, %v115
      %149 = vst.msk [vmem:[#allocation2 + $0x58] sm:$0xff] %vm137, %v116
      %150 = vst.msk [vmem:[#allocation2 + $0x60] sm:$0xff] %vm137, %v117
      %151 = vst.msk [vmem:[#allocation2 + $0x68] sm:$0xff] %vm137, %v118
      %152 = vst.msk [vmem:[#allocation2 + $0x70] sm:$0xff] %vm137, %v119
      %153 = vst.msk [vmem:[#allocation2 + $0x78] sm:$0xff] %vm137, %v120
      %vm154 = vcmask 146568
      %155 = vst.msk [vmem:[#allocation2] sm:$0xff] %vm154, 1.0
      %156 = vst.msk [vmem:[#allocation2 + $0x8] sm:$0xff] %vm154, 1.0
      %157 = vst.msk [vmem:[#allocation2 + $0x10] sm:$0xff] %vm154, 1.0
      %158 = vst.msk [vmem:[#allocation2 + $0x18] sm:$0xff] %vm154, 1.0
      %159 = vst.msk [vmem:[#allocation2 + $0x20] sm:$0xff] %vm154, 1.0
      %160 = vst.msk [vmem:[#allocation2 + $0x28] sm:$0xff] %vm154, 1.0
      %161 = vst.msk [vmem:[#allocation2 + $0x30] sm:$0xff] %vm154, 1.0
      %162 = vst.msk [vmem:[#allocation2 + $0x38] sm:$0xff] %vm154, 1.0
      %163 = vst.msk [vmem:[#allocation2 + $0x40] sm:$0xff] %vm154, 1.0
      %164 = vst.msk [vmem:[#allocation2 + $0x48] sm:$0xff] %vm154, 1.0
      %165 = vst.msk [vmem:[#allocation2 + $0x50] sm:$0xff] %vm154, 1.0
      %166 = vst.msk [vmem:[#allocation2 + $0x58] sm:$0xff] %vm154, 1.0
      %167 = vst.msk [vmem:[#allocation2 + $0x60] sm:$0xff] %vm154, 1.0
      %168 = vst.msk [vmem:[#allocation2 + $0x68] sm:$0xff] %vm154, 1.0
      %169 = vst.msk [vmem:[#allocation2 + $0x70] sm:$0xff] %vm154, 1.0
      %170 = vst.msk [vmem:[#allocation2 + $0x78] sm:$0xff] %vm154, 1.0
      %v171 = vadd.f32 %v24, %v24
      %v172 = vadd.f32 %v25, %v25
      %v173 = vadd.f32 %v26, %v26
      %v174 = vadd.f32 %v27, %v27
      %v175 = vadd.f32 %v28, %v28
      %v176 = vadd.f32 %v29, %v29
      %v177 = vadd.f32 %v30, %v30
      %v178 = vadd.f32 %v31, %v31
      %v179 = vadd.f32 %v32, %v32
      %v180 = vadd.f32 %v33, %v33
      %v181 = vadd.f32 %v34, %v34
      %v182 = vadd.f32 %v35, %v35
      %v183 = vadd.f32 %v36, %v36
      %v184 = vadd.f32 %v37, %v37
      %v185 = vadd.f32 %v38, %v38
      %v186 = vadd.f32 %v39, %v39
      %v187 = vsub.f32 0.0, %v171
      %v188 = vsub.f32 0.0, %v172
      %v189 = vsub.f32 0.0, %v173
      %v190 = vsub.f32 0.0, %v174
      %v191 = vsub.f32 0.0, %v175
      %v192 = vsub.f32 0.0, %v176
      %v193 = vsub.f32 0.0, %v177
      %v194 = vsub.f32 0.0, %v178
      %v195 = vsub.f32 0.0, %v179
      %v196 = vsub.f32 0.0, %v180
      %v197 = vsub.f32 0.0, %v181
      %v198 = vsub.f32 0.0, %v182
      %v199 = vsub.f32 0.0, %v183
      %v200 = vsub.f32 0.0, %v184
      %v201 = vsub.f32 0.0, %v185
      %v202 = vsub.f32 0.0, %v186
      %203 = vst.msk [vmem:[#allocation3] sm:$0xff] %vm56, %v187
      %204 = vst.msk [vmem:[#allocation3 + $0x8] sm:$0xff] %vm56, %v188
      %205 = vst.msk [vmem:[#allocation3 + $0x10] sm:$0xff] %vm56, %v189
      %206 = vst.msk [vmem:[#allocation3 + $0x18] sm:$0xff] %vm56, %v190
      %207 = vst.msk [vmem:[#allocation3 + $0x20] sm:$0xff] %vm56, %v191
      %208 = vst.msk [vmem:[#allocation3 + $0x28] sm:$0xff] %vm56, %v192
      %209 = vst.msk [vmem:[#allocation3 + $0x30] sm:$0xff] %vm56, %v193
      %210 = vst.msk [vmem:[#allocation3 + $0x38] sm:$0xff] %vm56, %v194
      %211 = vst.msk [vmem:[#allocation3 + $0x40] sm:$0xff] %vm56, %v195
      %212 = vst.msk [vmem:[#allocation3 + $0x48] sm:$0xff] %vm56, %v196
      %213 = vst.msk [vmem:[#allocation3 + $0x50] sm:$0xff] %vm56, %v197
      %214 = vst.msk [vmem:[#allocation3 + $0x58] sm:$0xff] %vm56, %v198
      %215 = vst.msk [vmem:[#allocation3 + $0x60] sm:$0xff] %vm56, %v199
      %216 = vst.msk [vmem:[#allocation3 + $0x68] sm:$0xff] %vm56, %v200
      %217 = vst.msk [vmem:[#allocation3 + $0x70] sm:$0xff] %vm56, %v201
      %218 = vst.msk [vmem:[#allocation3 + $0x78] sm:$0xff] %vm56, %v202
      %219 = vst.msk [vmem:[#allocation3] sm:$0xff] %vm137, 1.0
      %220 = vst.msk [vmem:[#allocation3 + $0x8] sm:$0xff] %vm137, 1.0
      %221 = vst.msk [vmem:[#allocation3 + $0x10] sm:$0xff] %vm137, 1.0
      %222 = vst.msk [vmem:[#allocation3 + $0x18] sm:$0xff] %vm137, 1.0
      %223 = vst.msk [vmem:[#allocation3 + $0x20] sm:$0xff] %vm137, 1.0
      %224 = vst.msk [vmem:[#allocation3 + $0x28] sm:$0xff] %vm137, 1.0
      %225 = vst.msk [vmem:[#allocation3 + $0x30] sm:$0xff] %vm137, 1.0
      %226 = vst.msk [vmem:[#allocation3 + $0x38] sm:$0xff] %vm137, 1.0
      %227 = vst.msk [vmem:[#allocation3 + $0x40] sm:$0xff] %vm137, 1.0
      %228 = vst.msk [vmem:[#allocation3 + $0x48] sm:$0xff] %vm137, 1.0
      %229 = vst.msk [vmem:[#allocation3 + $0x50] sm:$0xff] %vm137, 1.0
      %230 = vst.msk [vmem:[#allocation3 + $0x58] sm:$0xff] %vm137, 1.0
      %231 = vst.msk [vmem:[#allocation3 + $0x60] sm:$0xff] %vm137, 1.0
      %232 = vst.msk [vmem:[#allocation3 + $0x68] sm:$0xff] %vm137, 1.0
      %233 = vst.msk [vmem:[#allocation3 + $0x70] sm:$0xff] %vm137, 1.0
      %234 = vst.msk [vmem:[#allocation3 + $0x78] sm:$0xff] %vm137, 1.0
      %235 = vst.msk [vmem:[#allocation3] sm:$0xff] %vm154, %v105
      %236 = vst.msk [vmem:[#allocation3 + $0x8] sm:$0xff] %vm154, %v106
      %237 = vst.msk [vmem:[#allocation3 + $0x10] sm:$0xff] %vm154, %v107
      %238 = vst.msk [vmem:[#allocation3 + $0x18] sm:$0xff] %vm154, %v108
      %239 = vst.msk [vmem:[#allocation3 + $0x20] sm:$0xff] %vm154, %v109
      %240 = vst.msk [vmem:[#allocation3 + $0x28] sm:$0xff] %vm154, %v110
      %241 = vst.msk [vmem:[#allocation3 + $0x30] sm:$0xff] %vm154, %v111
      %242 = vst.msk [vmem:[#allocation3 + $0x38] sm:$0xff] %vm154, %v112
      %243 = vst.msk [vmem:[#allocation3 + $0x40] sm:$0xff] %vm154, %v113
      %244 = vst.msk [vmem:[#allocation3 + $0x48] sm:$0xff] %vm154, %v114
      %245 = vst.msk [vmem:[#allocation3 + $0x50] sm:$0xff] %vm154, %v115
      %246 = vst.msk [vmem:[#allocation3 + $0x58] sm:$0xff] %vm154, %v116
      %247 = vst.msk [vmem:[#allocation3 + $0x60] sm:$0xff] %vm154, %v117
      %248 = vst.msk [vmem:[#allocation3 + $0x68] sm:$0xff] %vm154, %v118
      %249 = vst.msk [vmem:[#allocation3 + $0x70] sm:$0xff] %vm154, %v119
      %250 = vst.msk [vmem:[#allocation3 + $0x78] sm:$0xff] %vm154, %v120
      %251 = vst [vmem:[#allocation4] sm:$0x1] 0.0
      %v252 = vlaneseq
      %v253 = vand.u32 %v252, 127
      %v254 = vld [vmem:[%s2] sm:$0xff]
      %v255 = vld [vmem:[%s2 + $0x8] sm:$0xff]
      %v256 = vld [vmem:[%s2 + $0x10] sm:$0xff]
      %v257 = vld [vmem:[%s2 + $0x18] sm:$0xff]
      %258 = vset.pattern.permute.xlu0 0
      %259 = vperm.xlu0 %258, %v254
      %v260 = vpop.permute.xlu0 %259
      %261 = vset.pattern.permute.xlu0 0
      %262 = vperm.xlu0 %261, %v255
      %v263 = vpop.permute.xlu0 %262
      %264 = vset.pattern.permute.xlu0 0
      %265 = vperm.xlu0 %264, %v256
      %v266 = vpop.permute.xlu0 %265
      %267 = vset.pattern.permute.xlu0 0
      %268 = vperm.xlu0 %267, %v257
      %v269 = vpop.permute.xlu0 %268
      %vm270 = vcmp.eq.s32.totalorder %v253, %v260
      %vm271 = vcmp.eq.s32.totalorder %v253, %v263
      %vm272 = vcmp.eq.s32.totalorder %v253, %v266
      %vm273 = vcmp.eq.s32.totalorder %v253, %v269
      %v274 = vsel %vm270, 1, 0
      %v275 = vsel %vm271, 1, 0
      %v276 = vsel %vm272, 1, 0
      %v277 = vsel %vm273, 1, 0
      %v278 = vcvt.s32.f32 %v274
      %v279 = vcvt.s32.f32 %v275
      %v280 = vcvt.s32.f32 %v276
      %v281 = vcvt.s32.f32 %v277
      %v282 = vld [vmem:[%s3] sm:$0xff]
      %v283 = vld [vmem:[%s3 + $0x8] sm:$0xff]
      %v284 = vld [vmem:[%s3 + $0x10] sm:$0xff]
      %v285 = vld [vmem:[%s3 + $0x18] sm:$0xff]
      %286 = vset.pattern.permute.xlu0 0
      %287 = vperm.xlu0 %286, %v282
      %v288 = vpop.permute.xlu0 %287
      %289 = vset.pattern.permute.xlu0 0
      %290 = vperm.xlu0 %289, %v283
      %v291 = vpop.permute.xlu0 %290
      %292 = vset.pattern.permute.xlu0 0
      %293 = vperm.xlu0 %292, %v284
      %v294 = vpop.permute.xlu0 %293
      %295 = vset.pattern.permute.xlu0 0
      %296 = vperm.xlu0 %295, %v285
      %v297 = vpop.permute.xlu0 %296
      %vm298 = vcmp.eq.s32.totalorder %v253, %v288
      %vm299 = vcmp.eq.s32.totalorder %v253, %v291
      %vm300 = vcmp.eq.s32.totalorder %v253, %v294
      %vm301 = vcmp.eq.s32.totalorder %v253, %v297
      %v302 = vsel %vm298, 1, 0
      %v303 = vsel %vm299, 1, 0
      %v304 = vsel %vm300, 1, 0
      %v305 = vsel %vm301, 1, 0
      %v306 = vcvt.s32.f32 %v302
      %v307 = vcvt.s32.f32 %v303
      %v308 = vcvt.s32.f32 %v304
      %v309 = vcvt.s32.f32 %v305
      %v310 = vsub.f32 %v278, %v306
      %v311 = vsub.f32 %v279, %v307
      %v312 = vsub.f32 %v280, %v308
      %v313 = vsub.f32 %v281, %v309
      %314 = vmatprep.subr.mxu0 0.0
      %315 = vmatpush1.msra.mxu0 %v24
      %316 = vmatprep.subr.mxu0 0.0
      %317 = vmatpush1.msra.mxu0 %v25
      %318 = vmatprep.subr.mxu0 0.0
      %319 = vmatpush1.msra.mxu0 %v26
      %320 = vmatprep.subr.mxu0 0.0
      %321 = vmatpush1.msra.mxu0 %v27
      %322 = vmatprep.subr.mxu0 0.0
      %323 = vmatpush1.msra.mxu0 %v28
      %324 = vmatprep.subr.mxu0 0.0
      %325 = vmatpush1.msra.mxu0 %v29
      %326 = vmatprep.subr.mxu0 0.0
      %327 = vmatpush1.msra.mxu0 %v30
      %328 = vmatprep.subr.mxu0 0.0
      %329 = vmatpush1.msra.mxu0 %v31
      %330 = vmatprep.subr.mxu0 0.0
      %331 = vmatpush1.msra.mxu0 %v32
      %332 = vmatprep.subr.mxu0 0.0
      %333 = vmatpush1.msra.mxu0 %v33
      %334 = vmatprep.subr.mxu0 0.0
      %335 = vmatpush1.msra.mxu0 %v34
      %336 = vmatprep.subr.mxu0 0.0
      %337 = vmatpush1.msra.mxu0 %v35
      %338 = vmatprep.subr.mxu0 0.0
      %339 = vmatpush1.msra.mxu0 %v36
      %340 = vmatprep.subr.mxu0 0.0
      %341 = vmatpush1.msra.mxu0 %v37
      %342 = vmatprep.subr.mxu0 0.0
      %343 = vmatpush1.msra.mxu0 %v38
      %344 = vmatprep.subr.mxu0 0.0
      %345 = vmatpush1.msra.mxu0 %v39
      %346 = vmatprep.subr.mxu0 0.0
      %347 = vmatpush1.msra.mxu0 0.0
      %348 = vmatprep.subr.mxu0 0.0
      %349 = vmatpush1.msra.mxu0 0.0
      %350 = vmatprep.subr.mxu0 0.0
      %351 = vmatpush1.msra.mxu0 0.0
      %352 = vmatprep.subr.mxu0 0.0
      %353 = vmatpush1.msra.mxu0 0.0
      %354 = vmatprep.subr.mxu0 0.0
      %355 = vmatpush1.msra.mxu0 0.0
      %356 = vmatprep.subr.mxu0 0.0
      %357 = vmatpush1.msra.mxu0 0.0
      %358 = vmatprep.subr.mxu0 0.0
      %359 = vmatpush1.msra.mxu0 0.0
      %360 = vmatprep.subr.mxu0 0.0
      %361 = vmatpush1.msra.mxu0 0.0
      %362 = vmatprep.subr.mxu0 0.0
      %363 = vmatpush1.msra.mxu0 0.0
      %364 = vmatprep.subr.mxu0 0.0
      %365 = vmatpush1.msra.mxu0 0.0
      %366 = vmatprep.subr.mxu0 0.0
      %367 = vmatpush1.msra.mxu0 0.0
      %368 = vmatprep.subr.mxu0 0.0
      %369 = vmatpush1.msra.mxu0 0.0
      %370 = vmatprep.subr.mxu0 0.0
      %371 = vmatpush1.msra.mxu0 0.0
      %372 = vmatprep.subr.mxu0 0.0
      %373 = vmatpush1.msra.mxu0 0.0
      %374 = vmatprep.subr.mxu0 0.0
      %375 = vmatpush1.msra.mxu0 0.0
      %376 = vmatprep.subr.mxu0 0.0
      %377 = vmatpush1.msra.mxu0 0.0
      %378 = vmatprep.mubr.f32.mxu0 0.0
      %379 = vmatmul.mubr.f32.gmra.mrb[0].mxu0 %v310
      %v380 = vpop.f32.mrb[0].mxu0
      %v381 = vadd.f32 0.0, %v380
      %v382 = vpop.f32.mrb[0].mxu0
      %383 = vmatprep.mubr.f32.mxu0 0.0
      %384 = vmatmul.mubr.f32.gmra.mrb[0].mxu0 %v311
      %v385 = vpop.f32.mrb[0].mxu0
      %v386 = vadd.f32 0.0, %v385
      %v387 = vpop.f32.mrb[0].mxu0
      %388 = vmatprep.mubr.f32.mxu0 0.0
      %389 = vmatmul.mubr.f32.gmra.mrb[0].mxu0 %v312
      %v390 = vpop.f32.mrb[0].mxu0
      %v391 = vadd.f32 0.0, %v390
      %v392 = vpop.f32.mrb[0].mxu0
      %393 = vmatprep.mubr.f32.mxu0 0.0
      %394 = vmatmul.mubr.f32.gmra.mrb[0].mxu0 %v313
      %v395 = vpop.f32.mrb[0].mxu0
      %v396 = vadd.f32 0.0, %v395
      %v397 = vpop.f32.mrb[0].mxu0
      %398 = vdwg.mxu0
      %v399 = vmul.f32 %v381, %v381
      %v400 = vmul.f32 %v386, %v386
      %v401 = vmul.f32 %v391, %v391
      %v402 = vmul.f32 %v396, %v396
      %v403 = vsel %vm56, %v399, 0.0
      %404 = vadd.xlane.f32.xlu0 %v403
      %v405 = vpop.xlane.xlu0 %404
      %v406 = vsel %vm56, %v400, 0.0
      %407 = vadd.xlane.f32.xlu0 %v406
      %v408 = vpop.xlane.xlu0 %407
      %v409 = vsel %vm56, %v401, 0.0
      %410 = vadd.xlane.f32.xlu0 %v409
      %v411 = vpop.xlane.xlu0 %410
      %v412 = vsel %vm56, %v402, 0.0
      %413 = vadd.xlane.f32.xlu0 %v412
      %v414 = vpop.xlane.xlu0 %413
      %v415 = vadd.f32 %v405, 16.0
      %v416 = vadd.f32 %v408, 16.0
      %v417 = vadd.f32 %v411, 16.0
      %v418 = vadd.f32 %v414, 16.0
      %v419 = vld [vmem:[%s1] sm:$0xff]
      %v420 = vld [vmem:[%s1 + $0x8] sm:$0xff]
      %v421 = vld [vmem:[%s1 + $0x10] sm:$0xff]
      %v422 = vld [vmem:[%s1 + $0x18] sm:$0xff]
      %v423 = vlog2.pop %v419
      %v424 = vmul.f32 %v423, 0.6931472
      %v425 = vlog2.pop %v420
      %v426 = vmul.f32 %v425, 0.6931472
      %v427 = vlog2.pop %v421
      %v428 = vmul.f32 %v427, 0.6931472
      %v429 = vlog2.pop %v422
      %v430 = vmul.f32 %v429, 0.6931472
      %v431 = vlog2.pop %v415
      %v432 = vmul.f32 %v431, 0.6931472
      %v433 = vlog2.pop %v416
      %v434 = vmul.f32 %v433, 0.6931472
      %v435 = vlog2.pop %v417
      %v436 = vmul.f32 %v435, 0.6931472
      %v437 = vlog2.pop %v418
      %v438 = vmul.f32 %v437, 0.6931472
      %v439 = vadd.f32 %v424, %v432
      %v440 = vadd.f32 %v426, %v434
      %v441 = vadd.f32 %v428, %v436
      %v442 = vadd.f32 %v430, %v438
      %v443 = vmul.f32 %v419, %v439
      %v444 = vmul.f32 %v420, %v440
      %v445 = vmul.f32 %v421, %v441
      %v446 = vmul.f32 %v422, %v442
      %vm447 = vcmask 7168
      %v448 = vsel %vm447, %v443, 0.0
      %v449 = vsel %vm447, %v444, 0.0
      %v450 = vadd.f32 %v448, %v449
      %v451 = vsel %vm447, %v445, 0.0
      %v452 = vadd.f32 %v450, %v451
      %v453 = vsel %vm447, %v446, 0.0
      %v454 = vadd.f32 %v452, %v453
      %455 = vadd.xlane.f32.xlu0 %v454
      %v456 = vpop.xlane.xlu0 %455
      %v457 = vrot.slane %v456, 4
      %v458 = vadd.f32 %v456, %v457
      %v459 = vrot.slane %v458, 2
      %v460 = vadd.f32 %v458, %v459
      %v461 = vrot.slane %v460, 1
      %v462 = vadd.f32 %v460, %v461
      %s463 = vtos %v462
      %v464 = vstv %s463
      %vm465 = vcmask 0
      %466 = vst.msk [vmem:[#allocation5] sm:$0x1] %vm465, %v464
      %v467 = vsel %vm447, %v419, 0.0
      %v468 = vsel %vm447, %v420, 0.0
      %v469 = vadd.f32 %v467, %v468
      %v470 = vsel %vm447, %v421, 0.0
      %v471 = vadd.f32 %v469, %v470
      %v472 = vsel %vm447, %v422, 0.0
      %v473 = vadd.f32 %v471, %v472
      %474 = vadd.xlane.f32.xlu0 %v473
      %v475 = vpop.xlane.xlu0 %474
      %v476 = vrot.slane %v475, 4
      %v477 = vadd.f32 %v475, %v476
      %v478 = vrot.slane %v477, 2
      %v479 = vadd.f32 %v477, %v478
      %v480 = vrot.slane %v479, 1
      %v481 = vadd.f32 %v479, %v480
      %s482 = vtos %v481
      %v483 = vstv %s482
      %484 = vst.msk [vmem:[#allocation6] sm:$0x1] %vm465, %v483
    $region21: #{tsne_forward.1} parent=1 // pred_fallthru
      _
    %s485 = smul.u32 0, 128
    %s486 = smul.u32 0, 128
    %s487 = scalar_lea.vmem [#allocation2], %s485
    %v488 = vld [vmem:[%s487] sm:$0xff]
    %v489 = vld [vmem:[%s487 + $0x8] sm:$0xff]
    %v490 = vld [vmem:[%s487 + $0x10] sm:$0xff]
    %v491 = vld [vmem:[%s487 + $0x18] sm:$0xff]
    %v492 = vld [vmem:[%s487 + $0x20] sm:$0xff]
    %v493 = vld [vmem:[%s487 + $0x28] sm:$0xff]
    %v494 = vld [vmem:[%s487 + $0x30] sm:$0xff]
    %v495 = vld [vmem:[%s487 + $0x38] sm:$0xff]
    %v496 = vld [vmem:[%s487 + $0x40] sm:$0xff]
    %v497 = vld [vmem:[%s487 + $0x48] sm:$0xff]
    %v498 = vld [vmem:[%s487 + $0x50] sm:$0xff]
    %v499 = vld [vmem:[%s487 + $0x58] sm:$0xff]
    %v500 = vld [vmem:[%s487 + $0x60] sm:$0xff]
    %v501 = vld [vmem:[%s487 + $0x68] sm:$0xff]
    %v502 = vld [vmem:[%s487 + $0x70] sm:$0xff]
    %v503 = vld [vmem:[%s487 + $0x78] sm:$0xff]
    %s504 = scalar_lea.vmem [#allocation3], %s486
    %v505 = vld [vmem:[%s504] sm:$0xff]
    %v506 = vld [vmem:[%s504 + $0x8] sm:$0xff]
    %v507 = vld [vmem:[%s504 + $0x10] sm:$0xff]
    %v508 = vld [vmem:[%s504 + $0x18] sm:$0xff]
    %v509 = vld [vmem:[%s504 + $0x20] sm:$0xff]
    %v510 = vld [vmem:[%s504 + $0x28] sm:$0xff]
    %v511 = vld [vmem:[%s504 + $0x30] sm:$0xff]
    %v512 = vld [vmem:[%s504 + $0x38] sm:$0xff]
    %v513 = vld [vmem:[%s504 + $0x40] sm:$0xff]
    %v514 = vld [vmem:[%s504 + $0x48] sm:$0xff]
    %v515 = vld [vmem:[%s504 + $0x50] sm:$0xff]
    %v516 = vld [vmem:[%s504 + $0x58] sm:$0xff]
    %v517 = vld [vmem:[%s504 + $0x60] sm:$0xff]
    %v518 = vld [vmem:[%s504 + $0x68] sm:$0xff]
    %v519 = vld [vmem:[%s504 + $0x70] sm:$0xff]
    %v520 = vld [vmem:[%s504 + $0x78] sm:$0xff]
    %vm521 = vcmask 146432
    %v523 = vsel %vm521, %v488, 0
    %v526 = vsel %vm521, %v489, 0
    %v529 = vsel %vm521, %v490, 0
    %v532 = vsel %vm521, %v491, 0
    %v535 = vsel %vm521, %v492, 0
    %v538 = vsel %vm521, %v493, 0
    %v541 = vsel %vm521, %v494, 0
    %v544 = vsel %vm521, %v495, 0
    %v547 = vsel %vm521, %v496, 0
    %v550 = vsel %vm521, %v497, 0
    %v553 = vsel %vm521, %v498, 0
    %v556 = vsel %vm521, %v499, 0
    %v559 = vsel %vm521, %v500, 0
    %v562 = vsel %vm521, %v501, 0
    %v565 = vsel %vm521, %v502, 0
    %v568 = vsel %vm521, %v503, 0
    %v571 = vsel %vm521, %v505, 0
    %v574 = vsel %vm521, %v506, 0
    %v577 = vsel %vm521, %v507, 0
    %v580 = vsel %vm521, %v508, 0
    %v583 = vsel %vm521, %v509, 0
    %v586 = vsel %vm521, %v510, 0
    %v589 = vsel %vm521, %v511, 0
    %v592 = vsel %vm521, %v512, 0
    %v595 = vsel %vm521, %v513, 0
    %v598 = vsel %vm521, %v514, 0
    %v601 = vsel %vm521, %v515, 0
    %v604 = vsel %vm521, %v516, 0
    %v607 = vsel %vm521, %v517, 0
    %v610 = vsel %vm521, %v518, 0
    %v613 = vsel %vm521, %v519, 0
    %v616 = vsel %vm521, %v520, 0
    %618 = vmatprep.subr.mxu0 0.0
    %619 = vmatpush1.xpose.msra.mxu0 %v571
    %620 = vmatprep.subr.mxu0 0.0
    %621 = vmatpush1.xpose.msra.mxu0 %v574
    %622 = vmatprep.subr.mxu0 0.0
    %623 = vmatpush1.xpose.msra.mxu0 %v577
    %624 = vmatprep.subr.mxu0 0.0
    %625 = vmatpush1.xpose.msra.mxu0 %v580
    %626 = vmatprep.subr.mxu0 0.0
    %627 = vmatpush1.xpose.msra.mxu0 %v583
    %628 = vmatprep.subr.mxu0 0.0
    %629 = vmatpush1.xpose.msra.mxu0 %v586
    %630 = vmatprep.subr.mxu0 0.0
    %631 = vmatpush1.xpose.msra.mxu0 %v589
    %632 = vmatprep.subr.mxu0 0.0
    %633 = vmatpush1.xpose.msra.mxu0 %v592
    %634 = vmatprep.subr.mxu0 0.0
    %635 = vmatpush1.xpose.msra.mxu0 %v595
    %636 = vmatprep.subr.mxu0 0.0
    %637 = vmatpush1.xpose.msra.mxu0 %v598
    %638 = vmatprep.subr.mxu0 0.0
    %639 = vmatpush1.xpose.msra.mxu0 %v601
    %640 = vmatprep.subr.mxu0 0.0
    %641 = vmatpush1.xpose.msra.mxu0 %v604
    %642 = vmatprep.subr.mxu0 0.0
    %643 = vmatpush1.xpose.msra.mxu0 %v607
    %644 = vmatprep.subr.mxu0 0.0
    %645 = vmatpush1.xpose.msra.mxu0 %v610
    %646 = vmatprep.subr.mxu0 0.0
    %647 = vmatpush1.xpose.msra.mxu0 %v613
    %648 = vmatprep.subr.mxu0 0.0
    %649 = vmatpush1.xpose.msra.mxu0 %v616
    %650 = vmatprep.subr.mxu0 0.0
    %651 = vmatpush1.xpose.msra.mxu0 0.0
    %652 = vmatprep.subr.mxu0 0.0
    %653 = vmatpush1.xpose.msra.mxu0 0.0
    %654 = vmatprep.subr.mxu0 0.0
    %655 = vmatpush1.xpose.msra.mxu0 0.0
    %656 = vmatprep.subr.mxu0 0.0
    %657 = vmatpush1.xpose.msra.mxu0 0.0
    %658 = vmatprep.subr.mxu0 0.0
    %659 = vmatpush1.xpose.msra.mxu0 0.0
    %660 = vmatprep.subr.mxu0 0.0
    %661 = vmatpush1.xpose.msra.mxu0 0.0
    %662 = vmatprep.subr.mxu0 0.0
    %663 = vmatpush1.xpose.msra.mxu0 0.0
    %664 = vmatprep.subr.mxu0 0.0
    %665 = vmatpush1.xpose.msra.mxu0 0.0
    %666 = vmatprep.subr.mxu0 0.0
    %667 = vmatpush1.xpose.msra.mxu0 0.0
    %668 = vmatprep.subr.mxu0 0.0
    %669 = vmatpush1.xpose.msra.mxu0 0.0
    %670 = vmatprep.subr.mxu0 0.0
    %671 = vmatpush1.xpose.msra.mxu0 0.0
    %672 = vmatprep.subr.mxu0 0.0
    %673 = vmatpush1.xpose.msra.mxu0 0.0
    %674 = vmatprep.subr.mxu0 0.0
    %675 = vmatpush1.xpose.msra.mxu0 0.0
    %676 = vmatprep.subr.mxu0 0.0
    %677 = vmatpush1.xpose.msra.mxu0 0.0
    %678 = vmatprep.subr.mxu0 0.0
    %679 = vmatpush1.xpose.msra.mxu0 0.0
    %680 = vmatprep.subr.mxu0 0.0
    %681 = vmatpush1.xpose.msra.mxu0 0.0
    %682 = vmatprep.mubr.f32.mxu0 0.0
    %683 = vmatmul.mubr.f32.gmra.mrb[0].mxu0 %v523
    %v684 = vpop.f32.mrb[0].mxu0
    %v685 = vadd.f32 0.0, %v684
    %v686 = vpop.f32.mrb[0].mxu0
    %687 = vmatprep.mubr.f32.mxu0 0.0
    %688 = vmatmul.mubr.f32.gmra.mrb[0].mxu0 %v526
    %v689 = vpop.f32.mrb[0].mxu0
    %v690 = vadd.f32 0.0, %v689
    %v691 = vpop.f32.mrb[0].mxu0
    %692 = vmatprep.mubr.f32.mxu0 0.0
    %693 = vmatmul.mubr.f32.gmra.mrb[0].mxu0 %v529
    %v694 = vpop.f32.mrb[0].mxu0
    %v695 = vadd.f32 0.0, %v694
    %v696 = vpop.f32.mrb[0].mxu0
    %697 = vmatprep.mubr.f32.mxu0 0.0
    %698 = vmatmul.mubr.f32.gmra.mrb[0].mxu0 %v532
    %v699 = vpop.f32.mrb[0].mxu0
    %v700 = vadd.f32 0.0, %v699
    %v701 = vpop.f32.mrb[0].mxu0
    %702 = vmatprep.mubr.f32.mxu0 0.0
    %703 = vmatmul.mubr.f32.gmra.mrb[0].mxu0 %v535
    %v704 = vpop.f32.mrb[0].mxu0
    %v705 = vadd.f32 0.0, %v704
    %v706 = vpop.f32.mrb[0].mxu0
    %707 = vmatprep.mubr.f32.mxu0 0.0
    %708 = vmatmul.mubr.f32.gmra.mrb[0].mxu0 %v538
    %v709 = vpop.f32.mrb[0].mxu0
    %v710 = vadd.f32 0.0, %v709
    %v711 = vpop.f32.mrb[0].mxu0
    %712 = vmatprep.mubr.f32.mxu0 0.0
    %713 = vmatmul.mubr.f32.gmra.mrb[0].mxu0 %v541
    %v714 = vpop.f32.mrb[0].mxu0
    %v715 = vadd.f32 0.0, %v714
    %v716 = vpop.f32.mrb[0].mxu0
    %717 = vmatprep.mubr.f32.mxu0 0.0
    %718 = vmatmul.mubr.f32.gmra.mrb[0].mxu0 %v544
    %v719 = vpop.f32.mrb[0].mxu0
    %v720 = vadd.f32 0.0, %v719
    %v721 = vpop.f32.mrb[0].mxu0
    %722 = vmatprep.mubr.f32.mxu0 0.0
    %723 = vmatmul.mubr.f32.gmra.mrb[0].mxu0 %v547
    %v724 = vpop.f32.mrb[0].mxu0
    %v725 = vadd.f32 0.0, %v724
    %v726 = vpop.f32.mrb[0].mxu0
    %727 = vmatprep.mubr.f32.mxu0 0.0
    %728 = vmatmul.mubr.f32.gmra.mrb[0].mxu0 %v550
    %v729 = vpop.f32.mrb[0].mxu0
    %v730 = vadd.f32 0.0, %v729
    %v731 = vpop.f32.mrb[0].mxu0
    %732 = vmatprep.mubr.f32.mxu0 0.0
    %733 = vmatmul.mubr.f32.gmra.mrb[0].mxu0 %v553
    %v734 = vpop.f32.mrb[0].mxu0
    %v735 = vadd.f32 0.0, %v734
    %v736 = vpop.f32.mrb[0].mxu0
    %737 = vmatprep.mubr.f32.mxu0 0.0
    %738 = vmatmul.mubr.f32.gmra.mrb[0].mxu0 %v556
    %v739 = vpop.f32.mrb[0].mxu0
    %v740 = vadd.f32 0.0, %v739
    %v741 = vpop.f32.mrb[0].mxu0
    %742 = vmatprep.mubr.f32.mxu0 0.0
    %743 = vmatmul.mubr.f32.gmra.mrb[0].mxu0 %v559
    %v744 = vpop.f32.mrb[0].mxu0
    %v745 = vadd.f32 0.0, %v744
    %v746 = vpop.f32.mrb[0].mxu0
    %747 = vmatprep.mubr.f32.mxu0 0.0
    %748 = vmatmul.mubr.f32.gmra.mrb[0].mxu0 %v562
    %v749 = vpop.f32.mrb[0].mxu0
    %v750 = vadd.f32 0.0, %v749
    %v751 = vpop.f32.mrb[0].mxu0
    %752 = vmatprep.mubr.f32.mxu0 0.0
    %753 = vmatmul.mubr.f32.gmra.mrb[0].mxu0 %v565
    %v754 = vpop.f32.mrb[0].mxu0
    %v755 = vadd.f32 0.0, %v754
    %v756 = vpop.f32.mrb[0].mxu0
    %757 = vmatprep.mubr.f32.mxu0 0.0
    %758 = vmatmul.mubr.f32.gmra.mrb[0].mxu0 %v568
    %v759 = vpop.f32.mrb[0].mxu0
    %v760 = vadd.f32 0.0, %v759
    %v761 = vpop.f32.mrb[0].mxu0
    %762 = vdwg.mxu0
    %v763 = vmax.f32 %v685, 1.0
    %v764 = vmax.f32 %v690, 1.0
    %v765 = vmax.f32 %v695, 1.0
    %v766 = vmax.f32 %v700, 1.0
    %v767 = vmax.f32 %v705, 1.0
    %v768 = vmax.f32 %v710, 1.0
    %v769 = vmax.f32 %v715, 1.0
    %v770 = vmax.f32 %v720, 1.0
    %v771 = vmax.f32 %v725, 1.0
    %v772 = vmax.f32 %v730, 1.0
    %v773 = vmax.f32 %v735, 1.0
    %v774 = vmax.f32 %v740, 1.0
    %v775 = vmax.f32 %v745, 1.0
    %v776 = vmax.f32 %v750, 1.0
    %v777 = vmax.f32 %v755, 1.0
    %v778 = vmax.f32 %v760, 1.0
    %v779 = vrcp.pop %v763
    %v780 = vrcp.pop %v764
    %v781 = vrcp.pop %v765
    %v782 = vrcp.pop %v766
    %v783 = vrcp.pop %v767
    %v784 = vrcp.pop %v768
    %v785 = vrcp.pop %v769
    %v786 = vrcp.pop %v770
    %v787 = vrcp.pop %v771
    %v788 = vrcp.pop %v772
    %v789 = vrcp.pop %v773
    %v790 = vrcp.pop %v774
    %v791 = vrcp.pop %v775
    %v792 = vrcp.pop %v776
    %v793 = vrcp.pop %v777
    %v794 = vrcp.pop %v778
    %v795 = vld [vmem:[#allocation4] sm:$0x1]
    %v796 = vadd.f32 %v779, %v780
    %v797 = vadd.f32 %v796, %v781
    %v798 = vadd.f32 %v797, %v782
    %v799 = vadd.f32 %v798, %v783
    %v800 = vadd.f32 %v799, %v784
    %v801 = vadd.f32 %v800, %v785
    %v802 = vadd.f32 %v801, %v786
    %v803 = vadd.f32 %v802, %v787
    %v804 = vadd.f32 %v803, %v788
    %v805 = vadd.f32 %v804, %v789
    %v806 = vadd.f32 %v805, %v790
    %v807 = vadd.f32 %v806, %v791
    %v808 = vadd.f32 %v807, %v792
    %v809 = vadd.f32 %v808, %v793
    %v810 = vadd.f32 %v809, %v794
    %v811 = vrot.slane %v810, 4
    %v812 = vadd.f32 %v810, %v811
    %v813 = vrot.slane %v812, 2
    %v814 = vadd.f32 %v812, %v813
    %v815 = vrot.slane %v814, 1
    %v816 = vadd.f32 %v814, %v815
    %v817 = vadd.f32 %v795, %v816
    %818 = vst [vmem:[#allocation4] sm:$0x1] %v817
    // Predicated region
    $region22: #{tsne_forward.1} parent=1 // pred_check
      _
    $region23: #{tsne_forward.1} parent=1 // pred_check_branch
      %820 = sbr.rel (%p20) target = $region25
    $region24: #{tsne_forward.1} parent=1 // pred_region
      %v821 = vld [vmem:[#allocation4] sm:$0x1]
      %vm822 = vcmask 1040384
      %v823 = vsel %vm822, %v821, 0.0
      %824 = vadd.xlane.f32.xlu0 %v823
      %v825 = vpop.xlane.xlu0 %824
      %v826 = vrot.slane %v825, 4
      %v827 = vadd.f32 %v825, %v826
      %v828 = vrot.slane %v827, 2
      %v829 = vadd.f32 %v827, %v828
      %v830 = vrot.slane %v829, 1
      %v831 = vadd.f32 %v829, %v830
      %s832 = vtos %v831
      %v833 = vstv %s832
      %v834 = vsub.f32 %v833, 128.0
      %v835 = vld [vmem:[#allocation5] sm:$0x1]
      %v836 = vlog2.pop %v834
      %v837 = vmul.f32 %v836, 0.6931472
      %v838 = vld [vmem:[#allocation6] sm:$0x1]
      %v839 = vmul.f32 %v837, %v838
      %v840 = vadd.f32 %v835, %v839
      %vm841 = vcmask 0
      %842 = vst.msk [vmem:[#allocation7] sm:$0x1] %vm841, %v840
    $region25: #{tsne_forward.1} parent=1 // pred_fallthru
      _
    // Predicated region
    $region26: #{tsne_forward.1} parent=1 // pred_check
      _
    $region27: #{tsne_forward.1} parent=1 // pred_check_branch
      %844 = sbr.rel (0) target = $region29
    $region28: #{tsne_forward.1} parent=1 // pred_region
      %s846 = ssub.s32 16, 16
      %847 = vsyncadd [#allocation8], %s846
      %s849 = sshll.u32 [#allocation7], 4
      %s850 = int_to_ptr.vmem [resolvable:$true] %s849
      %852 = dma.vmem_to_hbm [thread:$0]  %s850, 16, %s4, [#allocation8]
    $region29: #{tsne_forward.1} parent=1 // pred_fallthru
      _
    // Predicated region
    $region30: #{tsne_forward.1} parent=1 // pred_check
      _
    $region31: #{tsne_forward.1} parent=1 // pred_check_branch
      %854 = sbr.rel (0) target = $region33
    $region32: #{tsne_forward.1} parent=1 // pred_region
      %855 = dma.done [#allocation8], 16
    $region33: #{tsne_forward.1} parent=1 // pred_fallthru
      _
    %856 = vsyncpa [#allocation8], 1

</llo_original>
